<compile_context>
chip_gen: v7x
topology: tpu7x:2x2x1
jax: 0.10.0
libtpu: 0.0.40
codegen_flags: <defaults>
</compile_context>

<pallas_src>
import functools

import jax
import jax.numpy as jnp
from jax.experimental import pallas as pl
from jax.experimental.pallas import tpu as pltpu


def _triplet_kernel(a_ref, p_ref, n_ref, o_ref, ap_acc, an_acc, *, eps):
    k = pl.program_id(1)

    @pl.when(k == 0)
    def _():
        ap_acc[...] = jnp.zeros_like(ap_acc)
        an_acc[...] = jnp.zeros_like(an_acc)

    # Hot path: elementwise diff + squared-sum reduction, accumulate in f32.
    a = a_ref[...].astype(jnp.float32)
    p = p_ref[...].astype(jnp.float32)
    n = n_ref[...].astype(jnp.float32)

    dp = a - p
    dn = a - n
    ap_acc[...] += jnp.sum(dp * dp, axis=-1, keepdims=True)
    an_acc[...] += jnp.sum(dn * dn, axis=-1, keepdims=True)

    @pl.when(k == pl.num_programs(1) - 1)
    def _():
        d_ap = jnp.sqrt(ap_acc[...])
        d_an = jnp.sqrt(an_acc[...])
        x = d_ap - d_an + jnp.float32(eps)
        o_ref[...] = jnp.maximum(x, 0.0).astype(o_ref.dtype)


def _round_up(x, m):
    return ((x + m - 1) // m) * m


def _choose_blocks(B, D, itemsize, vmem_budget=24 * 1024 * 1024):
    """Pick (block_b, block_d): many grid steps, working set within budget."""
    sub = {4: 8, 2: 16, 1: 32}.get(itemsize, 8)  # sublane multiple per dtype

    # Feature-axis tile: keep full D unless it is very wide; only tile D when
    # it divides cleanly by a lane-aligned chunk (reduction axis can't be masked).
    block_d = D
    if D > 4096 and D % 128 == 0:
        for cand in range(4096, 127, -128):
            if D % cand == 0:
                block_d = cand
                break

    # Row tile: 3 input streams x 2 pipeline buffers must fit the budget, and
    # we want >= ~8 grid steps over the batch for pipelining / megacore.
    max_rows = max(sub, (vmem_budget // (6 * block_d * itemsize)) // sub * sub)
    target_rows = _round_up(max(1, -(-B // 8)), sub)
    block_b = min(max_rows, target_rows)
    if B <= block_b:
        block_b = B  # single full-dim block is always layout-legal
    return block_b, block_d


def triplet_loss(a, p, n, eps=1.0, block_b=None, block_d=None):
    """relu(||a-p||_2 - ||a-n||_2 + eps) per row. a, p, n: (B, D) -> (B,)."""
    assert a.ndim == 2 and a.shape == p.shape == n.shape
    B, D = a.shape
    itemsize = jnp.dtype(a.dtype).itemsize

    auto_b, auto_d = _choose_blocks(B, D, itemsize)
    if block_b is None:
        block_b = auto_b
    if block_d is None:
        block_d = auto_d
    if D % block_d != 0:
        block_d = D  # reduction axis must tile exactly; fall back to full D

    num_b = pl.cdiv(B, block_b)  # ragged last row-block is masked on writeback
    num_k = D // block_d

    kernel = functools.partial(_triplet_kernel, eps=eps)

    # Per-step VMEM: 3 inputs x 2 pipeline buffers + tiny output & scratch.
    step_bytes = 6 * block_b * block_d * itemsize + 4 * block_b * 4
    vmem_limit = min(64 << 20, max(32 << 20, step_bytes + (8 << 20)))

    cost = pl.CostEstimate(
        flops=6 * B * D,
        transcendentals=2 * B,
        bytes_accessed=3 * B * D * itemsize + B * 4,
    )

    out = pl.pallas_call(
        kernel,
        out_shape=jax.ShapeDtypeStruct((B, 1), jnp.float32),
        grid_spec=pltpu.PrefetchScalarGridSpec(
            num_scalar_prefetch=0,
            grid=(num_b, num_k),
            in_specs=[
                pl.BlockSpec((block_b, block_d), lambda i, k: (i, k)),
                pl.BlockSpec((block_b, block_d), lambda i, k: (i, k)),
                pl.BlockSpec((block_b, block_d), lambda i, k: (i, k)),
            ],
            out_specs=pl.BlockSpec((block_b, 1), lambda i, k: (i, 0)),
            scratch_shapes=[
                pltpu.VMEM((block_b, 1), jnp.float32),
                pltpu.VMEM((block_b, 1), jnp.float32),
            ],
        ),
        compiler_params=pltpu.CompilerParams(
            dimension_semantics=("parallel", "arbitrary"),
            vmem_limit_bytes=vmem_limit,
        ),
        cost_estimate=cost,
    )(a, p, n)
    return out[:, 0]  # (B,)


def triplet_loss_ref(a, p, n, eps=1.0):
    af, pf, nf = (x.astype(jnp.float32) for x in (a, p, n))
    d_ap = jnp.linalg.norm(af - pf, ord=2, axis=1)
    d_an = jnp.linalg.norm(af - nf, ord=2, axis=1)
    return jnp.maximum(d_ap - d_an + eps, 0.0)


if __name__ == "__main__":
    key = jax.random.PRNGKey(0)

    # Case 1: small shape consistent with the module (single-block path).
    ka, kp, kn, key = jax.random.split(key, 4)
    B, D = 8, 32
    a = jax.random.normal(ka, (B, D), dtype=jnp.float32)
    p = jax.random.normal(kp, (B, D), dtype=jnp.float32)
    n = jax.random.normal(kn, (B, D), dtype=jnp.float32)
    out = jax.block_until_ready(triplet_loss(a, p, n, eps=1.0))
    ref = triplet_loss_ref(a, p, n, eps=1.0)
    assert out.shape == (B,)
    assert jnp.allclose(out, ref, atol=1e-5, rtol=1e-5), (out, ref)

    # Case 2: exercise multi-step batch grid + tiled feature accumulator.
    ka, kp, kn, key = jax.random.split(key, 4)
    B2, D2 = 48, 256
    a2 = jax.random.normal(ka, (B2, D2), dtype=jnp.float32)
    p2 = jax.random.normal(kp, (B2, D2), dtype=jnp.float32)
    n2 = jax.random.normal(kn, (B2, D2), dtype=jnp.float32)
    out2 = jax.block_until_ready(
        triplet_loss(a2, p2, n2, eps=1.0, block_b=16, block_d=128)
    )
    ref2 = triplet_loss_ref(a2, p2, n2, eps=1.0)
    assert out2.shape == (B2,)
    assert jnp.allclose(out2, ref2, atol=1e-4, rtol=1e-5), (out2, ref2)

    print("KERNEL_OK")
</pallas_src>

<mosaic_0001>
module attributes {stable_mosaic.version = 11 : i64} {
  func.func @_triplet_kernel(%arg0: i32, %arg1: i32, %arg2: memref<8x32xf32, #tpu.memory_space<vmem>>, %arg3: memref<8x32xf32, #tpu.memory_space<vmem>>, %arg4: memref<8x32xf32, #tpu.memory_space<vmem>>, %arg5: memref<8x1xf32, #tpu.memory_space<vmem>>, %arg6: memref<8x1xf32, #tpu.memory_space<vmem>>, %arg7: memref<8x1xf32, #tpu.memory_space<vmem>>) attributes {dimension_semantics = [#tpu.dimension_semantics<parallel>, #tpu.dimension_semantics<arbitrary>], iteration_bounds = array<i64: 1, 1>, scalar_prefetch = 0 : i64, scratch_operands = 2 : i64, tpu.core_type = #tpu.core_type<tc>, window_params = [{transform_indices = @transform_0, window_bounds = array<i64: 8, 32>}, {transform_indices = @transform_1, window_bounds = array<i64: 8, 32>}, {transform_indices = @transform_2, window_bounds = array<i64: 8, 32>}, {transform_indices = @transform_3, window_bounds = array<i64: 8, 1>}]} {
    %c0_i32 = arith.constant 0 : i32
    %0 = arith.cmpi eq, %arg1, %c0_i32 : i32
    %1 = arith.extui %0 : i1 to i32
    %c0_i32_0 = arith.constant 0 : i32
    %2 = arith.cmpi ne, %1, %c0_i32_0 : i32
    scf.if %2 {
      %cst_17 = arith.constant 0.000000e+00 : f32
      %23 = vector.broadcast %cst_17 : f32 to vector<8x1xf32>
      %c0_18 = arith.constant 0 : index
      %c0_19 = arith.constant 0 : index
      %24 = vector.load %arg6[%c0_18, %c0_19] : memref<8x1xf32, #tpu.memory_space<vmem>>, vector<8x1xf32>
      tpu.vector_store %arg6[%c0_18, %c0_19], %23 {strides = array<i32>} : memref<8x1xf32, #tpu.memory_space<vmem>>, vector<8x1xf32>,
      %cst_20 = arith.constant 0.000000e+00 : f32
      %25 = vector.broadcast %cst_20 : f32 to vector<8x1xf32>
      %c0_21 = arith.constant 0 : index
      %c0_22 = arith.constant 0 : index
      %26 = vector.load %arg7[%c0_21, %c0_22] : memref<8x1xf32, #tpu.memory_space<vmem>>, vector<8x1xf32>
      tpu.vector_store %arg7[%c0_21, %c0_22], %25 {strides = array<i32>} : memref<8x1xf32, #tpu.memory_space<vmem>>, vector<8x1xf32>,
    } else {
    }
    %c0 = arith.constant 0 : index
    %c0_1 = arith.constant 0 : index
    %3 = vector.load %arg2[%c0, %c0_1] : memref<8x32xf32, #tpu.memory_space<vmem>>, vector<8x32xf32>
    %c0_2 = arith.constant 0 : index
    %c0_3 = arith.constant 0 : index
    %4 = vector.load %arg3[%c0_2, %c0_3] : memref<8x32xf32, #tpu.memory_space<vmem>>, vector<8x32xf32>
    %c0_4 = arith.constant 0 : index
    %c0_5 = arith.constant 0 : index
    %5 = vector.load %arg4[%c0_4, %c0_5] : memref<8x32xf32, #tpu.memory_space<vmem>>, vector<8x32xf32>
    %6 = arith.subf %3, %4 : vector<8x32xf32>
    %7 = arith.subf %3, %5 : vector<8x32xf32>
    %c0_6 = arith.constant 0 : index
    %c0_7 = arith.constant 0 : index
    %8 = vector.load %arg6[%c0_6, %c0_7] : memref<8x1xf32, #tpu.memory_space<vmem>>, vector<8x1xf32>
    %9 = arith.mulf %6, %6 : vector<8x32xf32>
    %cst = arith.constant dense<0.000000e+00> : vector<8xf32>
    %10 = vector.multi_reduction <add>, %9, %cst [1] : vector<8x32xf32> to vector<8xf32>
    %11 = vector.shape_cast %10 : vector<8xf32> to vector<8x1xf32>
    %12 = arith.addf %8, %11 : vector<8x1xf32>
    %c0_8 = arith.constant 0 : index
    %c0_9 = arith.constant 0 : index
    %13 = vector.load %arg6[%c0_8, %c0_9] : memref<8x1xf32, #tpu.memory_space<vmem>>, vector<8x1xf32>
    tpu.vector_store %arg6[%c0_8, %c0_9], %12 {strides = array<i32>} : memref<8x1xf32, #tpu.memory_space<vmem>>, vector<8x1xf32>,
    %c0_10 = arith.constant 0 : index
    %c0_11 = arith.constant 0 : index
    %14 = vector.load %arg7[%c0_10, %c0_11] : memref<8x1xf32, #tpu.memory_space<vmem>>, vector<8x1xf32>
    %15 = arith.mulf %7, %7 : vector<8x32xf32>
    %cst_12 = arith.constant dense<0.000000e+00> : vector<8xf32>
    %16 = vector.multi_reduction <add>, %15, %cst_12 [1] : vector<8x32xf32> to vector<8xf32>
    %17 = vector.shape_cast %16 : vector<8xf32> to vector<8x1xf32>
    %18 = arith.addf %14, %17 : vector<8x1xf32>
    %c0_13 = arith.constant 0 : index
    %c0_14 = arith.constant 0 : index
    %19 = vector.load %arg7[%c0_13, %c0_14] : memref<8x1xf32, #tpu.memory_space<vmem>>, vector<8x1xf32>
    tpu.vector_store %arg7[%c0_13, %c0_14], %18 {strides = array<i32>} : memref<8x1xf32, #tpu.memory_space<vmem>>, vector<8x1xf32>,
    %c0_i32_15 = arith.constant 0 : i32
    %20 = arith.cmpi eq, %arg1, %c0_i32_15 : i32
    %21 = arith.extui %20 : i1 to i32
    %c0_i32_16 = arith.constant 0 : i32
    %22 = arith.cmpi ne, %21, %c0_i32_16 : i32
    scf.if %22 {
      %c0_17 = arith.constant 0 : index
      %c0_18 = arith.constant 0 : index
      %23 = vector.load %arg6[%c0_17, %c0_18] : memref<8x1xf32, #tpu.memory_space<vmem>>, vector<8x1xf32>
      %24 = math.sqrt %23 : vector<8x1xf32>
      %c0_19 = arith.constant 0 : index
      %c0_20 = arith.constant 0 : index
      %25 = vector.load %arg7[%c0_19, %c0_20] : memref<8x1xf32, #tpu.memory_space<vmem>>, vector<8x1xf32>
      %26 = math.sqrt %25 : vector<8x1xf32>
      %27 = arith.subf %24, %26 : vector<8x1xf32>
      %cst_21 = arith.constant 1.000000e+00 : f32
      %28 = vector.broadcast %cst_21 : f32 to vector<8x1xf32>
      %29 = arith.addf %27, %28 : vector<8x1xf32>
      %cst_22 = arith.constant 0.000000e+00 : f32
      %30 = vector.broadcast %cst_22 : f32 to vector<8x1xf32>
      %31 = arith.maximumf %29, %30 : vector<8x1xf32>
      %c0_23 = arith.constant 0 : index
      %c0_24 = arith.constant 0 : index
      %32 = vector.load %arg5[%c0_23, %c0_24] : memref<8x1xf32, #tpu.memory_space<vmem>>, vector<8x1xf32>
      tpu.vector_store %arg5[%c0_23, %c0_24], %31 {strides = array<i32>} : memref<8x1xf32, #tpu.memory_space<vmem>>, vector<8x1xf32>,
    } else {
    }
    return
  }
  func.func @transform_0(%arg0: i32, %arg1: i32) -> (i32, i32) {
    %c0_i32 = arith.constant 0 : i32
    return %arg0, %arg1 : i32, i32
  }
  func.func @transform_1(%arg0: i32, %arg1: i32) -> (i32, i32) {
    %c0_i32 = arith.constant 0 : i32
    return %arg0, %arg1 : i32, i32
  }
  func.func @transform_2(%arg0: i32, %arg1: i32) -> (i32, i32) {
    %c0_i32 = arith.constant 0 : i32
    return %arg0, %arg1 : i32, i32
  }
  func.func @transform_3(%arg0: i32, %arg1: i32) -> (i32, i32) {
    %c0_i32 = arith.constant 0 : i32
    %c0_i32_0 = arith.constant 0 : i32
    return %arg0, %c0_i32 : i32, i32
  }
}

</mosaic_0001>

<llo_original>
// kernel: tpu_custom_call.1
$region0: #{tpu_custom_call.1}
  #allocation0 [shape = 'u32[]', space=smem, size = 0x4, offset = 0x4, fixed_abs, tag = 'smem constant byte address 0x4 - core index']
  #allocation1 [shape = 'u32[144,128]{1,0:T(1,128)}', space=vmem, size = 0x12000, scoped, tag = 'internal scratch']
  #allocation2 [shape = 'f32[8,1]{1,0:T(8,128)}', space=vmem, size = 0x1000, scoped, tag = 'scratch operand']
  #allocation3 [shape = 'f32[8,1]{1,0:T(8,128)}', space=vmem, size = 0x1000, scoped, tag = 'scratch operand']
  %s0 = inlined_call_operand.hbm [shape: f32[8,32], index: 0, kind: input, shape index: {}]
  %s1 = inlined_call_operand.hbm [shape: f32[8,32], index: 1, kind: input, shape index: {}]
  %s2 = inlined_call_operand.hbm [shape: f32[8,32], index: 2, kind: input, shape index: {}]
  %s3 = inlined_call_operand.vmem [shape: f32[8,1], index: 3, kind: output, shape index: {}]
  %s4 = sld [smem:[#allocation0]]
  $region42: #{tpu_custom_call.1} parent=0
    _
  %s6 = ssub.s32 1, %s4
  %s7 = scalar_select 0, %s6, %s4
  $region1: #{tpu_custom_call.1} parent=0
    #allocation4 [shape = 'u8[4096]{0}', space=vmem, size = 0x1000, scoped, tag = 'input window, operand 0, single buffered']
    #allocation5 [shape = 's32[1]{0}', space=sflag, size = 0x4, scoped, tag = 'scoped memory for tpu_custom_call.1']
    #allocation6 [shape = 'u8[4096]{0}', space=vmem, size = 0x1000, scoped, tag = 'input window, operand 1, single buffered']
    #allocation7 [shape = 's32[1]{0}', space=sflag, size = 0x4, scoped, tag = 'scoped memory for tpu_custom_call.1']
    #allocation8 [shape = 'u8[4096]{0}', space=vmem, size = 0x1000, scoped, tag = 'input window, operand 2, single buffered']
    %8 = vsyncpa [#allocation5], 0
    %9 = vsyncpa [#allocation7], 0
    // Predicated region
    $region2: #{tpu_custom_call.1} parent=1 // pred_check
      _
    $region3: #{tpu_custom_call.1} parent=1 // pred_check_branch
      %11 = sbr.rel (0) target = $region5
    $region4: #{tpu_custom_call.1} parent=1 // pred_region
      %s13 = ssub.s32 128, 128
      %14 = vsyncadd [#allocation5], %s13
      %s16 = sshll.u32 [#allocation4], 4
      %s17 = int_to_ptr.vmem [resolvable:$true] %s16
      %19 = dma.hbm_to_vmem [thread:$0]  %s0, 128, %s17, [#allocation5]
    $region5: #{tpu_custom_call.1} parent=1 // pred_fallthru
      _
    // Predicated region
    $region6: #{tpu_custom_call.1} parent=1 // pred_check
      _
    $region7: #{tpu_custom_call.1} parent=1 // pred_check_branch
      %21 = sbr.rel (0) target = $region9
    $region8: #{tpu_custom_call.1} parent=1 // pred_region
      %s23 = ssub.s32 128, 128
      %24 = vsyncadd [#allocation7], %s23
      %s26 = sshll.u32 [#allocation6], 4
      %s27 = int_to_ptr.vmem [resolvable:$true] %s26
      %29 = dma.hbm_to_vmem [thread:$0]  %s1, 128, %s27, [#allocation7]
    $region9: #{tpu_custom_call.1} parent=1 // pred_fallthru
      _
    // Predicated region
    $region10: #{tpu_custom_call.1} parent=1 // pred_check
      _
    $region11: #{tpu_custom_call.1} parent=1 // pred_check_branch
      %31 = sbr.rel (0) target = $region13
    $region12: #{tpu_custom_call.1} parent=1 // pred_region
      %s33 = ssub.s32 128, 128
      %34 = vsyncadd [#allocation7], %s33
      %s36 = sshll.u32 [#allocation8], 4
      %s37 = int_to_ptr.vmem [resolvable:$true] %s36
      %39 = dma.hbm_to_vmem [thread:$0]  %s2, 128, %s37, [#allocation7]
    $region13: #{tpu_custom_call.1} parent=1 // pred_fallthru
      _
    // Predicated region
    $region14: #{tpu_custom_call.1} parent=1 // pred_check
      _
    $region15: #{tpu_custom_call.1} parent=1 // pred_check_branch
      %41 = sbr.rel (0) target = $region17
    $region16: #{tpu_custom_call.1} parent=1 // pred_region
      %42 = dma.done [#allocation5], 128
    $region17: #{tpu_custom_call.1} parent=1 // pred_fallthru
      _
    // Predicated region
    $region18: #{tpu_custom_call.1} parent=1 // pred_check
      _
    $region19: #{tpu_custom_call.1} parent=1 // pred_check_branch
      %44 = sbr.rel (0) target = $region21
    $region20: #{tpu_custom_call.1} parent=1 // pred_region
      %45 = dma.done [#allocation7], 128
    $region21: #{tpu_custom_call.1} parent=1 // pred_fallthru
      _
    // Predicated region
    $region22: #{tpu_custom_call.1} parent=1 // pred_check
      _
    $region23: #{tpu_custom_call.1} parent=1 // pred_check_branch
      %47 = sbr.rel (0) target = $region25
    $region24: #{tpu_custom_call.1} parent=1 // pred_region
      %48 = dma.done [#allocation7], 128
    $region25: #{tpu_custom_call.1} parent=1 // pred_fallthru
      _
    %p49 = scmp.eq.s32.totalorder 0, 0
    // Predicated region
    $region26: #{tpu_custom_call.1} parent=1 // pred_check
      %p50 = pneg %p49
    $region27: #{tpu_custom_call.1} parent=1 // pred_check_branch
      %52 = sbr.rel (%p50) target = $region29
    $region28: #{tpu_custom_call.1} parent=1 // pred_region
      %vm53 = vcmask 7168
      %54 = vst.msk [vmem:[#allocation2] sm:$0xff] %vm53, 0.0
      %55 = vst.msk [vmem:[#allocation3] sm:$0xff] %vm53, 0.0
    $region29: #{tpu_custom_call.1} parent=1 // pred_fallthru
      _
    %v56 = vld [vmem:[#allocation4] sm:$0xff]
    %v57 = vld [vmem:[#allocation6] sm:$0xff]
    %v58 = vld [vmem:[#allocation8] sm:$0xff]
    %v59 = vsub.f32 %v56, %v57
    %v60 = vsub.f32 %v56, %v58
    %v61 = vld [vmem:[#allocation2] sm:$0xff]
    %v62 = vmul.f32 %v59, %v59
    %vm63 = vcmask 261120
    %v64 = vsel %vm63, %v62, 0.0
    %65 = vadd.xlane.f32.xlu0 %v64
    %v66 = vpop.xlane.xlu0 %65
    %v67 = vadd.f32 %v61, %v66
    %vm68 = vcmask 7168
    %69 = vst.msk [vmem:[#allocation2] sm:$0xff] %vm68, %v67
    %v70 = vld [vmem:[#allocation3] sm:$0xff]
    %v71 = vmul.f32 %v60, %v60
    %v72 = vsel %vm63, %v71, 0.0
    %73 = vadd.xlane.f32.xlu0 %v72
    %v74 = vpop.xlane.xlu0 %73
    %v75 = vadd.f32 %v70, %v74
    %76 = vst.msk [vmem:[#allocation3] sm:$0xff] %vm68, %v75
    // Predicated region
    $region30: #{tpu_custom_call.1} parent=1 // pred_check
      %p77 = pneg %p49
    $region31: #{tpu_custom_call.1} parent=1 // pred_check_branch
      %79 = sbr.rel (%p77) target = $region33
    $region32: #{tpu_custom_call.1} parent=1 // pred_region
      %v80 = vld [vmem:[#allocation2] sm:$0xff]
      %v81 = vrsqrt.pop %v80
      %v82 = vmul.f32 %v80, %v81
      %vm83 = vcmp.eq.f32.partialorder %v80, inf
      %v84 = vsel %vm83, %v80, %v82
      %vm85 = vcmp.eq.f32.partialorder %v80, 0.0
      %v86 = vand.u32 %v80, 2147483648
      %v87 = vsel %vm85, %v86, %v84
      %v88 = vld [vmem:[#allocation3] sm:$0xff]
      %v89 = vrsqrt.pop %v88
      %v90 = vmul.f32 %v88, %v89
      %vm91 = vcmp.eq.f32.partialorder %v88, inf
      %v92 = vsel %vm91, %v88, %v90
      %vm93 = vcmp.eq.f32.partialorder %v88, 0.0
      %v94 = vand.u32 %v88, 2147483648
      %v95 = vsel %vm93, %v94, %v92
      %v96 = vsub.f32 %v87, %v95
      %v97 = vadd.f32 %v96, 1.0
      %v98 = vmax.f32 %v97, 0.0
      %99 = vst.msk [vmem:[%s3] sm:$0xff] %vm68, %v98
    $region33: #{tpu_custom_call.1} parent=1 // pred_fallthru
      _
    // Predicated region
    $region34: #{tpu_custom_call.1} parent=1 // pred_check
      _
    $region35: #{tpu_custom_call.1} parent=1 // pred_check_branch
      %101 = sbr.rel (0) target = $region37
    $region36: #{tpu_custom_call.1} parent=1 // pred_region
      _
    $region37: #{tpu_custom_call.1} parent=1 // pred_fallthru
      _
    // Predicated region
    $region38: #{tpu_custom_call.1} parent=1 // pred_check
      _
    $region39: #{tpu_custom_call.1} parent=1 // pred_check_branch
      %103 = sbr.rel (0) target = $region41
    $region40: #{tpu_custom_call.1} parent=1 // pred_region
      _
    $region41: #{tpu_custom_call.1} parent=1 // pred_fallthru
      _
    %104 = vsyncpa [#allocation5], 1
    %105 = vsyncpa [#allocation7], 1

</llo_original>
